<compile_context>
chip_gen: v6e
topology: v6e:2x2x1
jax: 0.10.0
libtpu: 0.0.40
codegen_flags: <defaults>
</compile_context>

<pallas_src>
import functools

import jax
import jax.numpy as jnp
from jax.experimental import pallas as pl
from jax.experimental.pallas import tpu as pltpu


def ffn_kernel(gb_ref, x_ref, w1_ref, b1_ref, w2_ref, b2_ref, o_ref, *, hidden_dim):
    # gb_ref:  (1, 2) f32 in SMEM -> [gamma, beta]
    # x_ref:   (TM, H)  f32 row tile of the flattened input
    # w1_ref:  (H, 4H)  bf16 (resident), b1_ref: (1, 4H) f32
    # w2_ref:  (4H, H)  bf16 (resident), b2_ref: (1, H)  f32
    x = x_ref[...]  # already f32

    # fc1 + ReLU : bf16 MXU matmul, f32 accumulation, f32 bias/activation.
    h = jnp.dot(x.astype(jnp.bfloat16), w1_ref[...],
                preferred_element_type=jnp.float32) + b1_ref[...]
    h = jnp.maximum(h, 0.0)

    # fc2 + residual add (residual uses the un-cast f32 x).
    y = jnp.dot(h.astype(jnp.bfloat16), w2_ref[...],
                preferred_element_type=jnp.float32) + b2_ref[...] + x

    # Norm over last dim: unbiased variance (N-1 divisor), eps = 1e-8
    # (matches torch.var default + the reference Norm module).
    mu = jnp.mean(y, axis=-1, keepdims=True)
    d = y - mu
    var = jnp.sum(d * d, axis=-1, keepdims=True) * (1.0 / jnp.float32(hidden_dim - 1))
    y_norm = d * jax.lax.rsqrt(var + 1e-8)

    gamma = gb_ref[0, 0]
    beta = gb_ref[0, 1]
    o_ref[...] = (gamma * y_norm + beta).astype(o_ref.dtype)


def ffn_forward(x, w1, b1, w2, b2, gamma, beta, *, tile_m=1024, out_dtype=None,
                vmem_limit_bytes=32 * 1024 * 1024):
    """x: (B, S, H) float32. Returns (B, S, H) in out_dtype (default: x.dtype)."""
    B, S, H = x.shape
    H4 = w1.shape[1]
    M = B * S
    if out_dtype is None:
        out_dtype = x.dtype

    # Row tile: as large as requested, multiple of 8 (sublane), capped at M.
    tm = max(8, (min(tile_m, M) // 8) * 8)
    # Keep >= 2 grid steps when M allows so the "parallel" row axis can shard across
    # v7x's two TensorCores (harmless on v5e/v6e).
    if M >= 16:
        half = max(8, ((pl.cdiv(M, 2) + 7) // 8) * 8)
        tm = min(tm, half)
    grid_m = pl.cdiv(M, tm)

    # No wrapper-side pad/slice: Pallas handles a partial last block (masked writeback).
    x2 = x.reshape(M, H)

    # bf16 weights: halve resident VMEM / HBM bytes and hit the bf16 MXU path.
    w1_bf = w1.astype(jnp.bfloat16)
    w2_bf = w2.astype(jnp.bfloat16)
    b1_2 = b1.reshape(1, H4).astype(jnp.float32)
    b2_2 = b2.reshape(1, H).astype(jnp.float32)
    gb = jnp.concatenate([
        jnp.reshape(jnp.asarray(gamma, jnp.float32), (1,)),
        jnp.reshape(jnp.asarray(beta, jnp.float32), (1,)),
    ]).reshape(1, 2)

    kernel = functools.partial(ffn_kernel, hidden_dim=H)

    out2 = pl.pallas_call(
        kernel,
        out_shape=jax.ShapeDtypeStruct((M, H), out_dtype),
        grid_spec=pltpu.PrefetchScalarGridSpec(
            num_scalar_prefetch=0,
            grid=(grid_m,),
            in_specs=[
                pl.BlockSpec(memory_space=pltpu.MemorySpace.SMEM),   # [gamma, beta]
                pl.BlockSpec((tm, H), lambda i: (i, 0)),             # x row tile
                pl.BlockSpec((H, H4), lambda i: (0, 0)),             # w1 (resident)
                pl.BlockSpec((1, H4), lambda i: (0, 0)),             # b1 (resident)
                pl.BlockSpec((H4, H), lambda i: (0, 0)),             # w2 (resident)
                pl.BlockSpec((1, H), lambda i: (0, 0)),              # b2 (resident)
            ],
            out_specs=pl.BlockSpec((tm, H), lambda i: (i, 0)),
        ),
        compiler_params=pltpu.CompilerParams(
            dimension_semantics=("parallel",),
            vmem_limit_bytes=vmem_limit_bytes,
        ),
    )(gb, x2, w1_bf, b1_2, w2_bf, b2_2)

    return out2.reshape(B, S, H)


def init_params(key, hidden_dim):
    """Deterministic init matching the module's shapes.
    fc1.weight: xavier_normal (out=4H, in=H) -> stored transposed as (H, 4H)
    fc2.weight: xavier_normal (out=H, in=4H) -> stored transposed as (4H, H)
    biases: uniform(-1/sqrt(fan_in), 1/sqrt(fan_in))  (PyTorch Linear default)
    gamma=1.0, beta=0.0
    """
    H, H4 = hidden_dim, 4 * hidden_dim
    k1, k2, k3, k4 = jax.random.split(key, 4)

    std1 = (2.0 / (H + H4)) ** 0.5
    std2 = (2.0 / (H4 + H)) ** 0.5
    w1 = std1 * jax.random.normal(k1, (H, H4), dtype=jnp.float32)
    w2 = std2 * jax.random.normal(k2, (H4, H), dtype=jnp.float32)

    bound1 = 1.0 / (H ** 0.5)
    bound2 = 1.0 / (H4 ** 0.5)
    b1 = jax.random.uniform(k3, (H4,), minval=-bound1, maxval=bound1, dtype=jnp.float32)
    b2 = jax.random.uniform(k4, (H,), minval=-bound2, maxval=bound2, dtype=jnp.float32)

    gamma = jnp.float32(1.0)
    beta = jnp.float32(0.0)
    return w1, b1, w2, b2, gamma, beta


def _norm_ref(y, gamma, beta):
    mu = jnp.mean(y, axis=-1, keepdims=True)
    var = jnp.sum((y - mu) ** 2, axis=-1, keepdims=True) / (y.shape[-1] - 1)
    return gamma * (y - mu) / jnp.sqrt(var + 1e-8) + beta


def ffn_reference_f32(x, w1, b1, w2, b2, gamma, beta):
    """Pure-JAX f32 reference mirroring the PyTorch forward (dropout=False)."""
    h = jnp.maximum(x @ w1 + b1, 0.0)
    y = h @ w2 + b2 + x
    return _norm_ref(y, gamma, beta)


def ffn_reference_mixed(x, w1, b1, w2, b2, gamma, beta):
    """Same math with the kernel's bf16-input / f32-accumulate matmuls."""
    h = jnp.dot(x.astype(jnp.bfloat16), w1.astype(jnp.bfloat16),
                preferred_element_type=jnp.float32) + b1
    h = jnp.maximum(h, 0.0)
    y = jnp.dot(h.astype(jnp.bfloat16), w2.astype(jnp.bfloat16),
                preferred_element_type=jnp.float32) + b2 + x
    return _norm_ref(y, gamma, beta)


if __name__ == "__main__":
    HIDDEN = 128   # module-level hidden_dim in the source file

    key = jax.random.PRNGKey(0)
    kx1, kx2, kx3, kp = jax.random.split(key, 4)
    w1, b1, w2, b2, gamma, beta = init_params(kp, HIDDEN)

    # Case 1: small shape (M=16 -> two 8-row grid steps).
    B1, S1 = 2, 8
    x1 = jax.random.normal(kx1, (B1, S1, HIDDEN), dtype=jnp.float32)
    out1 = jax.block_until_ready(ffn_forward(x1, w1, b1, w2, b2, gamma, beta))
    assert out1.shape == (B1, S1, HIDDEN)
    assert jnp.allclose(out1, ffn_reference_mixed(x1, w1, b1, w2, b2, gamma, beta),
                        atol=2e-3, rtol=2e-3), "mismatch vs mixed ref (small)"
    assert jnp.allclose(out1, ffn_reference_f32(x1, w1, b1, w2, b2, gamma, beta),
                        atol=5e-2, rtol=5e-2), "mismatch vs f32 ref (small)"

    # Case 2: tile-aligned multi-step grid (M=192 -> two 96-row steps, no padding path).
    B2, S2 = 2, 96
    x2 = jax.random.normal(kx2, (B2, S2, HIDDEN), dtype=jnp.float32)
    out2 = jax.block_until_ready(ffn_forward(x2, w1, b1, w2, b2, gamma, beta))
    assert out2.shape == (B2, S2, HIDDEN)
    assert jnp.allclose(out2, ffn_reference_mixed(x2, w1, b1, w2, b2, gamma, beta),
                        atol=2e-3, rtol=2e-3), "mismatch vs mixed ref (aligned)"
    assert jnp.allclose(out2, ffn_reference_f32(x2, w1, b1, w2, b2, gamma, beta),
                        atol=5e-2, rtol=5e-2), "mismatch vs f32 ref (aligned)"

    # Case 3: ragged M (M=106, tm=56 -> partial last block, masked writeback, no pad/slice).
    B3, S3 = 2, 53
    x3 = jax.random.normal(kx3, (B3, S3, HIDDEN), dtype=jnp.float32)
    out3 = jax.block_until_ready(ffn_forward(x3, w1, b1, w2, b2, gamma, beta))
    assert out3.shape == (B3, S3, HIDDEN)
    assert jnp.allclose(out3, ffn_reference_mixed(x3, w1, b1, w2, b2, gamma, beta),
                        atol=2e-3, rtol=2e-3), "mismatch vs mixed ref (ragged)"
    assert jnp.allclose(out3, ffn_reference_f32(x3, w1, b1, w2, b2, gamma, beta),
                        atol=5e-2, rtol=5e-2), "mismatch vs f32 ref (ragged)"

    # Case 4: optional bf16 output (store-traffic optimization); re-validated per review.
    out4 = jax.block_until_ready(
        ffn_forward(x2, w1, b1, w2, b2, gamma, beta, out_dtype=jnp.bfloat16))
    assert out4.dtype == jnp.bfloat16
    assert jnp.allclose(out4.astype(jnp.float32),
                        ffn_reference_mixed(x2, w1, b1, w2, b2, gamma, beta),
                        atol=3e-2, rtol=3e-2), "mismatch vs mixed ref (bf16 out)"

    # NOTE: dropout path (dropout=True) is not exercised; the forward default is
    # dropout=False so nn.Dropout is a no-op here.
    print("KERNEL_OK")
</pallas_src>

<mosaic_0001>
module attributes {stable_mosaic.version = 11 : i64} {
  func.func @ffn_kernel(%arg0: i32, %arg1: memref<1x2xf32, #tpu.memory_space<smem>>, %arg2: memref<8x128xf32, #tpu.memory_space<vmem>>, %arg3: memref<128x512xbf16, #tpu.memory_space<vmem>>, %arg4: memref<1x512xf32, #tpu.memory_space<vmem>>, %arg5: memref<512x128xbf16, #tpu.memory_space<vmem>>, %arg6: memref<1x128xf32, #tpu.memory_space<vmem>>, %arg7: memref<8x128xf32, #tpu.memory_space<vmem>>) attributes {dimension_semantics = [#tpu.dimension_semantics<parallel>], iteration_bounds = array<i64: 2>, scalar_prefetch = 0 : i64, scratch_operands = 0 : i64, tpu.core_type = #tpu.core_type<tc>, window_params = [{transform_indices = @transform_0, window_bounds = array<i64: 1, 2>}, {transform_indices = @transform_1, window_bounds = array<i64: 8, 128>}, {pipeline_mode = #tpu.pipeline_mode<synchronous>, transform_indices = @transform_2, window_bounds = array<i64: 128, 512>}, {pipeline_mode = #tpu.pipeline_mode<synchronous>, transform_indices = @transform_3, window_bounds = array<i64: 1, 512>}, {pipeline_mode = #tpu.pipeline_mode<synchronous>, transform_indices = @transform_4, window_bounds = array<i64: 512, 128>}, {pipeline_mode = #tpu.pipeline_mode<synchronous>, transform_indices = @transform_5, window_bounds = array<i64: 1, 128>}, {transform_indices = @transform_6, window_bounds = array<i64: 8, 128>}]} {
    %c0 = arith.constant 0 : index
    %c0_0 = arith.constant 0 : index
    %0 = vector.load %arg2[%c0, %c0_0] : memref<8x128xf32, #tpu.memory_space<vmem>>, vector<8x128xf32>
    %1 = arith.truncf %0 : vector<8x128xf32> to vector<8x128xbf16>
    %c0_1 = arith.constant 0 : index
    %c0_2 = arith.constant 0 : index
    %2 = vector.load %arg3[%c0_1, %c0_2] : memref<128x512xbf16, #tpu.memory_space<vmem>>, vector<128x512xbf16>
    %cst = arith.constant dense<0.000000e+00> : vector<8x512xf32>
    %3 = tpu.matmul %1, %2, %cst {dimension_numbers = #tpu.dot_dimension_numbers<[1], [0], [0], [1], [0, 0, 1, 1], [], []>} : vector<8x128xbf16>, vector<128x512xbf16>, vector<8x512xf32> -> vector<8x512xf32>
    %c0_3 = arith.constant 0 : index
    %c0_4 = arith.constant 0 : index
    %4 = vector.load %arg4[%c0_3, %c0_4] : memref<1x512xf32, #tpu.memory_space<vmem>>, vector<1x512xf32>
    %5 = vector.broadcast %4 : vector<1x512xf32> to vector<8x512xf32>
    %6 = arith.addf %3, %5 : vector<8x512xf32>
    %cst_5 = arith.constant 0.000000e+00 : f32
    %7 = vector.broadcast %cst_5 : f32 to vector<8x512xf32>
    %8 = arith.maximumf %6, %7 : vector<8x512xf32>
    %9 = arith.truncf %8 : vector<8x512xf32> to vector<8x512xbf16>
    %c0_6 = arith.constant 0 : index
    %c0_7 = arith.constant 0 : index
    %10 = vector.load %arg5[%c0_6, %c0_7] : memref<512x128xbf16, #tpu.memory_space<vmem>>, vector<512x128xbf16>
    %cst_8 = arith.constant dense<0.000000e+00> : vector<8x128xf32>
    %11 = tpu.matmul %9, %10, %cst_8 {dimension_numbers = #tpu.dot_dimension_numbers<[1], [0], [0], [1], [0, 0, 1, 1], [], []>} : vector<8x512xbf16>, vector<512x128xbf16>, vector<8x128xf32> -> vector<8x128xf32>
    %c0_9 = arith.constant 0 : index
    %c0_10 = arith.constant 0 : index
    %12 = vector.load %arg6[%c0_9, %c0_10] : memref<1x128xf32, #tpu.memory_space<vmem>>, vector<1x128xf32>
    %13 = vector.broadcast %12 : vector<1x128xf32> to vector<8x128xf32>
    %14 = arith.addf %11, %13 : vector<8x128xf32>
    %15 = arith.addf %14, %0 : vector<8x128xf32>
    %cst_11 = arith.constant dense<0.000000e+00> : vector<8xf32>
    %16 = vector.multi_reduction <add>, %15, %cst_11 [1] : vector<8x128xf32> to vector<8xf32>
    %17 = vector.shape_cast %16 : vector<8xf32> to vector<8x1xf32>
    %cst_12 = arith.constant 1.280000e+02 : f32
    %18 = vector.broadcast %cst_12 : f32 to vector<8x1xf32>
    %19 = arith.divf %17, %18 : vector<8x1xf32>
    %20 = vector.broadcast %19 : vector<8x1xf32> to vector<8x128xf32>
    %21 = arith.subf %15, %20 : vector<8x128xf32>
    %22 = arith.mulf %21, %21 : vector<8x128xf32>
    %cst_13 = arith.constant dense<0.000000e+00> : vector<8xf32>
    %23 = vector.multi_reduction <add>, %22, %cst_13 [1] : vector<8x128xf32> to vector<8xf32>
    %24 = vector.shape_cast %23 : vector<8xf32> to vector<8x1xf32>
    %cst_14 = arith.constant 1.000000e+00 : f32
    %cst_15 = arith.constant 1.270000e+02 : f32
    %25 = arith.divf %cst_14, %cst_15 : f32
    %26 = vector.broadcast %25 : f32 to vector<8x1xf32>
    %27 = arith.mulf %24, %26 : vector<8x1xf32>
    %cst_16 = arith.constant 9.99999993E-9 : f32
    %28 = vector.broadcast %cst_16 : f32 to vector<8x1xf32>
    %29 = arith.addf %27, %28 : vector<8x1xf32>
    %30 = math.rsqrt %29 : vector<8x1xf32>
    %31 = vector.broadcast %30 : vector<8x1xf32> to vector<8x128xf32>
    %32 = arith.mulf %21, %31 : vector<8x128xf32>
    %c0_17 = arith.constant 0 : index
    %c0_18 = arith.constant 0 : index
    %33 = memref.load %arg1[%c0_17, %c0_18] : memref<1x2xf32, #tpu.memory_space<smem>>
    %c0_19 = arith.constant 0 : index
    %c1 = arith.constant 1 : index
    %34 = memref.load %arg1[%c0_19, %c1] : memref<1x2xf32, #tpu.memory_space<smem>>
    %35 = vector.broadcast %33 : f32 to vector<8x128xf32>
    %36 = arith.mulf %35, %32 : vector<8x128xf32>
    %37 = vector.broadcast %34 : f32 to vector<8x128xf32>
    %38 = arith.addf %36, %37 : vector<8x128xf32>
    %c0_20 = arith.constant 0 : index
    %c0_21 = arith.constant 0 : index
    %39 = vector.load %arg7[%c0_20, %c0_21] : memref<8x128xf32, #tpu.memory_space<vmem>>, vector<8x128xf32>
    tpu.vector_store %arg7[%c0_20, %c0_21], %38 {strides = array<i32>} : memref<8x128xf32, #tpu.memory_space<vmem>>, vector<8x128xf32>,
    return
  }
  func.func @transform_0(%arg0: i32) -> (i32, i32) {
    %c0_i32 = arith.constant 0 : i32
    %c0_i32_0 = arith.constant 0 : i32
    %c0_i32_1 = arith.constant 0 : i32
    return %c0_i32, %c0_i32_0 : i32, i32
  }
  func.func @transform_1(%arg0: i32) -> (i32, i32) {
    %c0_i32 = arith.constant 0 : i32
    %c0_i32_0 = arith.constant 0 : i32
    return %arg0, %c0_i32 : i32, i32
  }
  func.func @transform_2(%arg0: i32) -> (i32, i32) {
    %c0_i32 = arith.constant 0 : i32
    %c0_i32_0 = arith.constant 0 : i32
    %c0_i32_1 = arith.constant 0 : i32
    return %c0_i32, %c0_i32_0 : i32, i32
  }
  func.func @transform_3(%arg0: i32) -> (i32, i32) {
    %c0_i32 = arith.constant 0 : i32
    %c0_i32_0 = arith.constant 0 : i32
    %c0_i32_1 = arith.constant 0 : i32
    return %c0_i32, %c0_i32_0 : i32, i32
  }
  func.func @transform_4(%arg0: i32) -> (i32, i32) {
    %c0_i32 = arith.constant 0 : i32
    %c0_i32_0 = arith.constant 0 : i32
    %c0_i32_1 = arith.constant 0 : i32
    return %c0_i32, %c0_i32_0 : i32, i32
  }
  func.func @transform_5(%arg0: i32) -> (i32, i32) {
    %c0_i32 = arith.constant 0 : i32
    %c0_i32_0 = arith.constant 0 : i32
    %c0_i32_1 = arith.constant 0 : i32
    return %c0_i32, %c0_i32_0 : i32, i32
  }
  func.func @transform_6(%arg0: i32) -> (i32, i32) {
    %c0_i32 = arith.constant 0 : i32
    %c0_i32_0 = arith.constant 0 : i32
    return %arg0, %c0_i32 : i32, i32
  }
}

</mosaic_0001>

<llo_original>
// kernel: tpu_custom_call.1
$region0: #{tpu_custom_call.1}
  #allocation0 [shape = 'u32[]', space=smem, size = 0x4, offset = 0x4, fixed_abs, tag = 'smem constant byte address 0x4 - core index']
  #allocation1 [shape = 'u32[144,128]{1,0:T(1,128)}', space=vmem, size = 0x12000, scoped, tag = 'internal scratch']
  %s0 = inlined_call_operand.hbm [shape: f32[1,2], index: 0, kind: input, shape index: {}]
  %s1 = inlined_call_operand.hbm [shape: f32[16,128], index: 1, kind: input, shape index: {}]
  %s2 = inlined_call_operand.hbm [shape: bf16[128,512], index: 2, kind: input, shape index: {}]
  %s3 = inlined_call_operand.vmem [shape: f32[1,512], index: 3, kind: input, shape index: {}]
  %s4 = inlined_call_operand.hbm [shape: bf16[512,128], index: 4, kind: input, shape index: {}]
  %s5 = inlined_call_operand.vmem [shape: f32[1,128], index: 5, kind: input, shape index: {}]
  %s6 = inlined_call_operand.hbm [shape: f32[16,128], index: 6, kind: output, shape index: {}]
  %s7 = sld [smem:[#allocation0]]
  $region73: #{tpu_custom_call.1} parent=0
    _
  %s9 = ssub.s32 1, %s7
  %s10 = scalar_select 0, %s9, %s7
  $region1: #{tpu_custom_call.1} parent=0
    #allocation2 [shape = 'u8[512]{0}', space=smem, size = 0x200, scoped, tag = 'input window, operand 0, single buffered']
    #allocation3 [shape = 's32[2]{0}', space=sflag, size = 0x8, scoped, tag = 'scoped memory for tpu_custom_call.1']
    #allocation4 [shape = 's32[2]{0}', space=sflag, size = 0x8, scoped, tag = 'scoped memory for tpu_custom_call.1']
    #allocation5 [shape = 's32[2]{0}', space=sflag, size = 0x8, scoped, tag = 'scoped memory for tpu_custom_call.1']
    #allocation6 [shape = 'u8[8192]{0}', space=vmem, size = 0x2000, scoped, tag = 'input window, operand 1']
    #allocation7 [shape = 'u8[131072]{0}', space=vmem, size = 0x20000, scoped, tag = 'input window, operand 2, single buffered']
    #allocation8 [shape = 's32[1]{0}', space=sflag, size = 0x4, scoped, tag = 'scoped memory for tpu_custom_call.1']
    #allocation9 [shape = 'u8[131072]{0}', space=vmem, size = 0x20000, scoped, tag = 'input window, operand 4, single buffered']
    #allocation10 [shape = 'u8[8192]{0}', space=vmem, size = 0x2000, scoped, tag = 'output window, operand 0']
    %11 = vsyncpa [#allocation5], 0
    %12 = vsyncpa [#allocation3], 0
    %s13 = scalar_lea.sflag [#allocation3], 1
    %14 = vsyncpa %s13, 0
    %15 = vsyncpa [#allocation8], 0
    %16 = vsyncpa [#allocation4], 0
    %s17 = scalar_lea.sflag [#allocation4], 1
    %18 = vsyncpa %s17, 0
    loop: start=0, step=1, limit=4
    $region2: #{tpu_custom_call.1} parent=1 // loop_pre_header
      _
    $region3: #{tpu_custom_call.1} parent=1 // loop_header
      %s20 = sphi 0, %s24
      %p21 = scmp.ge.s32.totalorder %s20, 4
      %s28 = sphi 0, %s28
      %s30 = sphi 0, %s28
      %s31 = sphi 0, %s30
      %s45 = sphi 0, %s31
      %s51 = sphi 0, %s53
      %s54 = sphi 0, %s51
      %s55 = sphi 0, %s54
      %s71 = sphi 0, %s55
      %s75 = sphi 0, %s75
      %s77 = sphi 0, %s75
      %s78 = sphi 0, %s77
      %s92 = sphi 0, %s78
      %s96 = sphi 0, %s96
      %s98 = sphi 0, %s96
      %s99 = sphi 0, %s98
      %s113 = sphi 0, %s99
      %s117 = sphi 0, %s117
      %s119 = sphi 0, %s117
      %s120 = sphi 0, %s119
      %s134 = sphi 0, %s120
      %s138 = sphi 0, %s138
      %s140 = sphi 0, %s138
      %s141 = sphi 0, %s140
      %s155 = sphi 0, %s141
      %s161 = sphi 0, %s163
      %s164 = sphi 0, %s161
      %s165 = sphi 0, %s164
      %s181 = sphi 0, %s165
    $region4: #{tpu_custom_call.1} parent=1 // loop_header_branch
      %23 = sbr.rel (%p21) target = $region8
    $region5: #{tpu_custom_call.1} parent=1 // loop_body
      %s25 = ssub.s32 %s20, 1
      %s26 = ssub.s32 %s20, 2
      %s27 = sadd.s32 %s20, 1
      %s29 = sadd.s32 %s28, 1
      %p32 = scmp.eq.s32.totalorder %s20, 1
      %p33 = scmp.ne.s32.totalorder %s28, %s30
      %p34 = scmp.eq.s32.totalorder %s20, 0
      %p35 = por %p33, %p34
      %p36 = scmp.ne.s32.totalorder %s28, %s30
      %p37 = scmp.eq.s32.totalorder %s25, 1
      %p38 = por %p36, %p37
      %p39 = scmp.ne.s32.totalorder %s30, %s31
      %p40 = scmp.eq.s32.totalorder %s25, 0
      %p41 = por %p39, %p40
      %p42 = scmp.ne.s32.totalorder %s30, %s31
      %p43 = scmp.eq.s32.totalorder %s26, 1
      %p44 = por %p42, %p43
      %p46 = scmp.ne.s32.totalorder %s31, %s45
      %p47 = scmp.eq.s32.totalorder %s26, 0
      %p48 = por %p46, %p47
      %s49 = ssub.s32 %s20, %s27
      %p50 = scmp.eq.s32.totalorder %s49, 0
      %s52 = sadd.s32 %s51, 1
      %s53 = scalar_select %p50, %s51, %s52
      %p56 = pneg %p50
      %p57 = scmp.eq.s32.totalorder %s20, 1
      %p58 = por %p56, %p57
      %p59 = scmp.ne.s32.totalorder %s51, %s54
      %p60 = scmp.eq.s32.totalorder %s20, 0
      %p61 = por %p59, %p60
      %p62 = scmp.ne.s32.totalorder %s51, %s54
      %p63 = scmp.eq.s32.totalorder %s25, 1
      %p64 = por %p62, %p63
      %p65 = scmp.ne.s32.totalorder %s54, %s55
      %p66 = scmp.eq.s32.totalorder %s25, 0
      %p67 = por %p65, %p66
      %p68 = scmp.ne.s32.totalorder %s54, %s55
      %p69 = scmp.eq.s32.totalorder %s26, 1
      %p70 = por %p68, %p69
      %p72 = scmp.ne.s32.totalorder %s55, %s71
      %p73 = scmp.eq.s32.totalorder %s26, 0
      %p74 = por %p72, %p73
      %s76 = sadd.s32 %s75, 1
      %p79 = scmp.eq.s32.totalorder %s20, 1
      %p80 = scmp.ne.s32.totalorder %s75, %s77
      %p81 = scmp.eq.s32.totalorder %s20, 0
      %p82 = por %p80, %p81
      %p83 = scmp.ne.s32.totalorder %s75, %s77
      %p84 = scmp.eq.s32.totalorder %s25, 1
      %p85 = por %p83, %p84
      %p86 = scmp.ne.s32.totalorder %s77, %s78
      %p87 = scmp.eq.s32.totalorder %s25, 0
      %p88 = por %p86, %p87
      %p89 = scmp.ne.s32.totalorder %s77, %s78
      %p90 = scmp.eq.s32.totalorder %s26, 1
      %p91 = por %p89, %p90
      %p93 = scmp.ne.s32.totalorder %s78, %s92
      %p94 = scmp.eq.s32.totalorder %s26, 0
      %p95 = por %p93, %p94
      %s97 = sadd.s32 %s96, 1
      %p100 = scmp.eq.s32.totalorder %s20, 1
      %p101 = scmp.ne.s32.totalorder %s96, %s98
      %p102 = scmp.eq.s32.totalorder %s20, 0
      %p103 = por %p101, %p102
      %p104 = scmp.ne.s32.totalorder %s96, %s98
      %p105 = scmp.eq.s32.totalorder %s25, 1
      %p106 = por %p104, %p105
      %p107 = scmp.ne.s32.totalorder %s98, %s99
      %p108 = scmp.eq.s32.totalorder %s25, 0
      %p109 = por %p107, %p108
      %p110 = scmp.ne.s32.totalorder %s98, %s99
      %p111 = scmp.eq.s32.totalorder %s26, 1
      %p112 = por %p110, %p111
      %p114 = scmp.ne.s32.totalorder %s99, %s113
      %p115 = scmp.eq.s32.totalorder %s26, 0
      %p116 = por %p114, %p115
      %s118 = sadd.s32 %s117, 1
      %p121 = scmp.eq.s32.totalorder %s20, 1
      %p122 = scmp.ne.s32.totalorder %s117, %s119
      %p123 = scmp.eq.s32.totalorder %s20, 0
      %p124 = por %p122, %p123
      %p125 = scmp.ne.s32.totalorder %s117, %s119
      %p126 = scmp.eq.s32.totalorder %s25, 1
      %p127 = por %p125, %p126
      %p128 = scmp.ne.s32.totalorder %s119, %s120
      %p129 = scmp.eq.s32.totalorder %s25, 0
      %p130 = por %p128, %p129
      %p131 = scmp.ne.s32.totalorder %s119, %s120
      %p132 = scmp.eq.s32.totalorder %s26, 1
      %p133 = por %p131, %p132
      %p135 = scmp.ne.s32.totalorder %s120, %s134
      %p136 = scmp.eq.s32.totalorder %s26, 0
      %p137 = por %p135, %p136
      %s139 = sadd.s32 %s138, 1
      %p142 = scmp.eq.s32.totalorder %s20, 1
      %p143 = scmp.ne.s32.totalorder %s138, %s140
      %p144 = scmp.eq.s32.totalorder %s20, 0
      %p145 = por %p143, %p144
      %p146 = scmp.ne.s32.totalorder %s138, %s140
      %p147 = scmp.eq.s32.totalorder %s25, 1
      %p148 = por %p146, %p147
      %p149 = scmp.ne.s32.totalorder %s140, %s141
      %p150 = scmp.eq.s32.totalorder %s25, 0
      %p151 = por %p149, %p150
      %p152 = scmp.ne.s32.totalorder %s140, %s141
      %p153 = scmp.eq.s32.totalorder %s26, 1
      %p154 = por %p152, %p153
      %p156 = scmp.ne.s32.totalorder %s141, %s155
      %p157 = scmp.eq.s32.totalorder %s26, 0
      %p158 = por %p156, %p157
      %s159 = ssub.s32 %s20, %s27
      %p160 = scmp.eq.s32.totalorder %s159, 0
      %s162 = sadd.s32 %s161, 1
      %s163 = scalar_select %p160, %s161, %s162
      %p166 = pneg %p160
      %p167 = scmp.eq.s32.totalorder %s20, 1
      %p168 = por %p166, %p167
      %p169 = scmp.ne.s32.totalorder %s161, %s164
      %p170 = scmp.eq.s32.totalorder %s20, 0
      %p171 = por %p169, %p170
      %p172 = scmp.ne.s32.totalorder %s161, %s164
      %p173 = scmp.eq.s32.totalorder %s25, 1
      %p174 = por %p172, %p173
      %p175 = scmp.ne.s32.totalorder %s164, %s165
      %p176 = scmp.eq.s32.totalorder %s25, 0
      %p177 = por %p175, %p176
      %p178 = scmp.ne.s32.totalorder %s164, %s165
      %p179 = scmp.eq.s32.totalorder %s26, 1
      %p180 = por %p178, %p179
      %p182 = scmp.ne.s32.totalorder %s165, %s181
      %p183 = scmp.eq.s32.totalorder %s26, 0
      %p184 = por %p182, %p183
      %p185 = scmp.le.s32.totalorder 1, %s20
      %p186 = scmp.lt.s32.totalorder %s20, 3
      %p187 = pnand %p185, %p186
      %p188 = pneg %p187
      // Predicated region
      $region9: #{tpu_custom_call.1} parent=5 // pred_check
        _
      $region10: #{tpu_custom_call.1} parent=5 // pred_check_branch
        %190 = sbr.rel (%p187) target = $region12
      $region11: #{tpu_custom_call.1} parent=5 // pred_region
        %s191 = ssub.s32 %s20, 1
        // Predicated region
        $region13: #{tpu_custom_call.1} parent=11 // pred_check
          %p192 = pneg %p41
        $region14: #{tpu_custom_call.1} parent=11 // pred_check_branch
          %194 = sbr.rel (%p192) target = $region16
        $region15: #{tpu_custom_call.1} parent=11 // pred_region
          %s196 = ssub.s32 16, 16
          %197 = vsyncadd [#allocation5], %s196
          %200 = dma.hbm_to_smem %s0, 16, [#allocation2], [#allocation5]
        $region16: #{tpu_custom_call.1} parent=11 // pred_fallthru
          _
        // Predicated region
        $region17: #{tpu_custom_call.1} parent=11 // pred_check
          %p201 = pneg %p88
        $region18: #{tpu_custom_call.1} parent=11 // pred_check_branch
          %203 = sbr.rel (%p201) target = $region20
        $region19: #{tpu_custom_call.1} parent=11 // pred_region
          %s205 = ssub.s32 4096, 4096
          %206 = vsyncadd [#allocation8], %s205
          %s207 = sshll.u32 [#allocation7], 4
          %s208 = int_to_ptr.vmem [resolvable:$true] %s207
          %213 = dma.hbm_to_vmem [thread:$0]  %s2, 4096, %s208, [#allocation8], 256, 256, 16
        $region20: #{tpu_custom_call.1} parent=11 // pred_fallthru
          _
        // Predicated region
        $region21: #{tpu_custom_call.1} parent=11 // pred_check
          %p214 = pneg %p109
        $region22: #{tpu_custom_call.1} parent=11 // pred_check_branch
          %216 = sbr.rel (%p214) target = $region24
        $region23: #{tpu_custom_call.1} parent=11 // pred_region
          _
        $region24: #{tpu_custom_call.1} parent=11 // pred_fallthru
          _
        // Predicated region
        $region25: #{tpu_custom_call.1} parent=11 // pred_check
          %p217 = pneg %p130
        $region26: #{tpu_custom_call.1} parent=11 // pred_check_branch
          %219 = sbr.rel (%p217) target = $region28
        $region27: #{tpu_custom_call.1} parent=11 // pred_region
          %s221 = ssub.s32 4096, 4096
          %222 = vsyncadd [#allocation8], %s221
          %s223 = sshll.u32 [#allocation9], 4
          %s224 = int_to_ptr.vmem [resolvable:$true] %s223
          %229 = dma.hbm_to_vmem [thread:$0]  %s4, 4096, %s224, [#allocation8], 64, 64, 4
        $region28: #{tpu_custom_call.1} parent=11 // pred_fallthru
          _
        // Predicated region
        $region29: #{tpu_custom_call.1} parent=11 // pred_check
          %p230 = pneg %p151
        $region30: #{tpu_custom_call.1} parent=11 // pred_check_branch
          %232 = sbr.rel (%p230) target = $region32
        $region31: #{tpu_custom_call.1} parent=11 // pred_region
          _
        $region32: #{tpu_custom_call.1} parent=11 // pred_fallthru
          _
      $region12: #{tpu_custom_call.1} parent=5 // pred_fallthru
        _
      %p233 = scmp.lt.s32.totalorder %s20, 2
      // Predicated region
      $region33: #{tpu_custom_call.1} parent=5 // pred_check
        %p234 = pneg %p233
      $region34: #{tpu_custom_call.1} parent=5 // pred_check_branch
        %236 = sbr.rel (%p234) target = $region36
      $region35: #{tpu_custom_call.1} parent=5 // pred_region
        // Predicated region
        $region37: #{tpu_custom_call.1} parent=35 // pred_check
          %p237 = pneg %p61
        $region38: #{tpu_custom_call.1} parent=35 // pred_check_branch
          %239 = sbr.rel (%p237) target = $region40
        $region39: #{tpu_custom_call.1} parent=35 // pred_region
          %s240 = sand.u32 %s51, 1
          %s241 = scalar_lea.sflag [#allocation3], %s240
          %s242 = sand.u32 %s51, 1
          %s243 = smul.addr %s242, 8
          %s244 = scalar_lea.vmem [#allocation6], %s243
          %s246 = ssub.s32 128, 128
          %247 = vsyncadd %s241, %s246
          %s248 = smul.addr %s20, 128
          %s249 = scalar_lea.hbm %s1, %s248
          %s251 = sshll.u32 %s244, 4
          %s252 = int_to_ptr.vmem [resolvable:$true] %s251
          %254 = dma.hbm_to_vmem [thread:$0]  %s249, 128, %s252, %s241
        $region40: #{tpu_custom_call.1} parent=35 // pred_fallthru
          _
      $region36: #{tpu_custom_call.1} parent=5 // pred_fallthru
        _
      %p255 = scmp.le.s32.totalorder 1, %s20
      %p256 = scmp.lt.s32.totalorder %s20, 3
      %p257 = pnand %p255, %p256
      %p258 = pneg %p257
      // Predicated region
      $region41: #{tpu_custom_call.1} parent=5 // pred_check
        _
      $region42: #{tpu_custom_call.1} parent=5 // pred_check_branch
        %260 = sbr.rel (%p257) target = $region44
      $region43: #{tpu_custom_call.1} parent=5 // pred_region
        %s261 = ssub.s32 %s20, 1
        // Predicated region
        $region45: #{tpu_custom_call.1} parent=43 // pred_check
          %p262 = pneg %p41
        $region46: #{tpu_custom_call.1} parent=43 // pred_check_branch
          %264 = sbr.rel (%p262) target = $region48
        $region47: #{tpu_custom_call.1} parent=43 // pred_region
          %265 = dma.done [#allocation5], 16
        $region48: #{tpu_custom_call.1} parent=43 // pred_fallthru
          _
        %s266 = sand.u32 %s54, 1
        %s267 = scalar_lea.sflag [#allocation3], %s266
        %s268 = sand.u32 %s54, 1
        %s269 = smul.addr %s268, 8
        %s270 = scalar_lea.vmem [#allocation6], %s269
        // Predicated region
        $region49: #{tpu_custom_call.1} parent=43 // pred_check
          %p271 = pneg %p67
        $region50: #{tpu_custom_call.1} parent=43 // pred_check_branch
          %273 = sbr.rel (%p271) target = $region52
        $region51: #{tpu_custom_call.1} parent=43 // pred_region
          %274 = dma.done %s267, 128
        $region52: #{tpu_custom_call.1} parent=43 // pred_fallthru
          _
        // Predicated region
        $region53: #{tpu_custom_call.1} parent=43 // pred_check
          %p275 = pneg %p88
        $region54: #{tpu_custom_call.1} parent=43 // pred_check_branch
          %277 = sbr.rel (%p275) target = $region56
        $region55: #{tpu_custom_call.1} parent=43 // pred_region
          %278 = dma.done [#allocation8], 4096
        $region56: #{tpu_custom_call.1} parent=43 // pred_fallthru
          _
        // Predicated region
        $region57: #{tpu_custom_call.1} parent=43 // pred_check
          %p279 = pneg %p130
        $region58: #{tpu_custom_call.1} parent=43 // pred_check_branch
          %281 = sbr.rel (%p279) target = $region60
        $region59: #{tpu_custom_call.1} parent=43 // pred_region
          %282 = dma.done [#allocation8], 4096
        $region60: #{tpu_custom_call.1} parent=43 // pred_fallthru
          _
        %283 = sfence
        %p284 = pneg %p41
        %p285 = pneg %p38
        %s286 = sand.u32 %s54, 1
        %s287 = scalar_lea.sflag [#allocation3], %s286
        %s288 = sand.u32 %s54, 1
        %s289 = smul.addr %s288, 8
        %s290 = scalar_lea.vmem [#allocation6], %s289
        %p291 = pneg %p67
        %p292 = pneg %p64
        %p293 = pneg %p88
        %p294 = pneg %p85
        %p295 = pneg %p109
        %p296 = pneg %p106
        %p297 = pneg %p130
        %p298 = pneg %p127
        %p299 = pneg %p151
        %p300 = pneg %p148
        %p301 = pneg %p177
        %p302 = pneg %p174
        %s303 = sand.u32 %s164, 1
        %s304 = scalar_lea.sflag [#allocation4], %s303
        %s305 = sand.u32 %s164, 1
        %s306 = smul.addr %s305, 8
        %s307 = scalar_lea.vmem [#allocation10], %s306
        %v309 = vld [vmem:[%s270] sm:$0xff]
        %v310 = vpack.c.bf16 %v309, %v309
        %v311 = vld [vmem:[#allocation7] sm:$0xff]
        %v312 = vld [vmem:[#allocation7 + $0x8] sm:$0xff]
        %v313 = vld [vmem:[#allocation7 + $0x10] sm:$0xff]
        %v314 = vld [vmem:[#allocation7 + $0x18] sm:$0xff]
        %v315 = vld [vmem:[#allocation7 + $0x20] sm:$0xff]
        %v316 = vld [vmem:[#allocation7 + $0x28] sm:$0xff]
        %v317 = vld [vmem:[#allocation7 + $0x30] sm:$0xff]
        %v318 = vld [vmem:[#allocation7 + $0x38] sm:$0xff]
        %v319 = vld [vmem:[#allocation7 + $0x40] sm:$0xff]
        %v320 = vld [vmem:[#allocation7 + $0x48] sm:$0xff]
        %v321 = vld [vmem:[#allocation7 + $0x50] sm:$0xff]
        %v322 = vld [vmem:[#allocation7 + $0x58] sm:$0xff]
        %v323 = vld [vmem:[#allocation7 + $0x60] sm:$0xff]
        %v324 = vld [vmem:[#allocation7 + $0x68] sm:$0xff]
        %v325 = vld [vmem:[#allocation7 + $0x70] sm:$0xff]
        %v326 = vld [vmem:[#allocation7 + $0x78] sm:$0xff]
        %v327 = vld [vmem:[#allocation7 + $0x80] sm:$0xff]
        %v328 = vld [vmem:[#allocation7 + $0x88] sm:$0xff]
        %v329 = vld [vmem:[#allocation7 + $0x90] sm:$0xff]
        %v330 = vld [vmem:[#allocation7 + $0x98] sm:$0xff]
        %v331 = vld [vmem:[#allocation7 + $0xa0] sm:$0xff]
        %v332 = vld [vmem:[#allocation7 + $0xa8] sm:$0xff]
        %v333 = vld [vmem:[#allocation7 + $0xb0] sm:$0xff]
        %v334 = vld [vmem:[#allocation7 + $0xb8] sm:$0xff]
        %v335 = vld [vmem:[#allocation7 + $0xc0] sm:$0xff]
        %v336 = vld [vmem:[#allocation7 + $0xc8] sm:$0xff]
        %v337 = vld [vmem:[#allocation7 + $0xd0] sm:$0xff]
        %v338 = vld [vmem:[#allocation7 + $0xd8] sm:$0xff]
        %v339 = vld [vmem:[#allocation7 + $0xe0] sm:$0xff]
        %v340 = vld [vmem:[#allocation7 + $0xe8] sm:$0xff]
        %v341 = vld [vmem:[#allocation7 + $0xf0] sm:$0xff]
        %v342 = vld [vmem:[#allocation7 + $0xf8] sm:$0xff]
        %v343 = vld [vmem:[%s3] sm:$0xf]
        %v345 = vlaneseq
        %v346 = vshrl.u32 %v345, 7
        %v347 = vsub.s32 0, %v346
        %v348 = vrot.slane %v343, %v347
        %v349 = vlaneseq
        %v350 = vshrl.u32 %v349, 7
        %v351 = vsub.s32 1, %v350
        %v352 = vrot.slane %v343, %v351
        %v353 = vlaneseq
        %v354 = vshrl.u32 %v353, 7
        %v355 = vsub.s32 2, %v354
        %v356 = vrot.slane %v343, %v355
        %v357 = vlaneseq
        %v358 = vshrl.u32 %v357, 7
        %v359 = vsub.s32 3, %v358
        %v360 = vrot.slane %v343, %v359
        %v397 = vunpack.c.l.b16 %v311
        %v398 = vunpack.c.h.b16 %v311
        %v399 = vunpack.c.l.b16 %v312
        %v400 = vunpack.c.h.b16 %v312
        %v401 = vunpack.c.l.b16 %v313
        %v402 = vunpack.c.h.b16 %v313
        %v403 = vunpack.c.l.b16 %v314
        %v404 = vunpack.c.h.b16 %v314
        %v405 = vunpack.c.l.b16 %v315
        %v406 = vunpack.c.h.b16 %v315
        %v407 = vunpack.c.l.b16 %v316
        %v408 = vunpack.c.h.b16 %v316
        %v409 = vunpack.c.l.b16 %v317
        %v410 = vunpack.c.h.b16 %v317
        %v411 = vunpack.c.l.b16 %v318
        %v412 = vunpack.c.h.b16 %v318
        %v413 = vunpack.c.l.b16 %v319
        %v414 = vunpack.c.h.b16 %v319
        %v415 = vunpack.c.l.b16 %v320
        %v416 = vunpack.c.h.b16 %v320
        %v417 = vunpack.c.l.b16 %v321
        %v418 = vunpack.c.h.b16 %v321
        %v419 = vunpack.c.l.b16 %v322
        %v420 = vunpack.c.h.b16 %v322
        %v421 = vunpack.c.l.b16 %v323
        %v422 = vunpack.c.h.b16 %v323
        %v423 = vunpack.c.l.b16 %v324
        %v424 = vunpack.c.h.b16 %v324
        %v425 = vunpack.c.l.b16 %v325
        %v426 = vunpack.c.h.b16 %v325
        %v427 = vunpack.c.l.b16 %v326
        %v428 = vunpack.c.h.b16 %v326
        %v429 = vunpack.c.l.b16 %v327
        %v430 = vunpack.c.h.b16 %v327
        %v431 = vunpack.c.l.b16 %v328
        %v432 = vunpack.c.h.b16 %v328
        %v433 = vunpack.c.l.b16 %v329
        %v434 = vunpack.c.h.b16 %v329
        %v435 = vunpack.c.l.b16 %v330
        %v436 = vunpack.c.h.b16 %v330
        %v437 = vunpack.c.l.b16 %v331
        %v438 = vunpack.c.h.b16 %v331
        %v439 = vunpack.c.l.b16 %v332
        %v440 = vunpack.c.h.b16 %v332
        %v441 = vunpack.c.l.b16 %v333
        %v442 = vunpack.c.h.b16 %v333
        %v443 = vunpack.c.l.b16 %v334
        %v444 = vunpack.c.h.b16 %v334
        %v445 = vunpack.c.l.b16 %v335
        %v446 = vunpack.c.h.b16 %v335
        %v447 = vunpack.c.l.b16 %v336
        %v448 = vunpack.c.h.b16 %v336
        %v449 = vunpack.c.l.b16 %v337
        %v450 = vunpack.c.h.b16 %v337
        %v451 = vunpack.c.l.b16 %v338
        %v452 = vunpack.c.h.b16 %v338
        %v453 = vunpack.c.l.b16 %v339
        %v454 = vunpack.c.h.b16 %v339
        %v455 = vunpack.c.l.b16 %v340
        %v456 = vunpack.c.h.b16 %v340
        %v457 = vunpack.c.l.b16 %v341
        %v458 = vunpack.c.h.b16 %v341
        %v459 = vunpack.c.l.b16 %v342
        %v460 = vunpack.c.h.b16 %v342
        %v461 = vpack.c.b16 %v401, %v397
        %v462 = vpack.c.b16 %v402, %v398
        %v463 = vpack.c.b16 %v403, %v399
        %v464 = vpack.c.b16 %v404, %v400
        %v465 = vpack.c.b16 %v409, %v405
        %v466 = vpack.c.b16 %v410, %v406
        %v467 = vpack.c.b16 %v411, %v407
        %v468 = vpack.c.b16 %v412, %v408
        %v469 = vpack.c.b16 %v417, %v413
        %v470 = vpack.c.b16 %v418, %v414
        %v471 = vpack.c.b16 %v419, %v415
        %v472 = vpack.c.b16 %v420, %v416
        %v473 = vpack.c.b16 %v425, %v421
        %v474 = vpack.c.b16 %v426, %v422
        %v475 = vpack.c.b16 %v427, %v423
        %v476 = vpack.c.b16 %v428, %v424
        %v477 = vpack.c.b16 %v433, %v429
        %v478 = vpack.c.b16 %v434, %v430
        %v479 = vpack.c.b16 %v435, %v431
        %v480 = vpack.c.b16 %v436, %v432
        %v481 = vpack.c.b16 %v441, %v437
        %v482 = vpack.c.b16 %v442, %v438
        %v483 = vpack.c.b16 %v443, %v439
        %v484 = vpack.c.b16 %v444, %v440
        %v485 = vpack.c.b16 %v449, %v445
        %v486 = vpack.c.b16 %v450, %v446
        %v487 = vpack.c.b16 %v451, %v447
        %v488 = vpack.c.b16 %v452, %v448
        %v489 = vpack.c.b16 %v457, %v453
        %v490 = vpack.c.b16 %v458, %v454
        %v491 = vpack.c.b16 %v459, %v455
        %v492 = vpack.c.b16 %v460, %v456
        %525 = vmatprep.subr.bf16.mxu0 %v490
        %526 = vmatpush1.bf16.msra.mxu0 %v489
        %527 = vmatprep.subr.bf16.mxu0 %v486
        %528 = vmatpush1.bf16.msra.mxu0 %v485
        %529 = vmatprep.subr.bf16.mxu0 %v482
        %530 = vmatpush1.bf16.msra.mxu0 %v481
        %531 = vmatprep.subr.bf16.mxu0 %v478
        %532 = vmatpush1.bf16.msra.mxu0 %v477
        %533 = vmatprep.subr.bf16.mxu0 %v474
        %534 = vmatpush1.bf16.msra.mxu0 %v473
        %535 = vmatprep.subr.bf16.mxu0 %v470
        %536 = vmatpush1.bf16.msra.mxu0 %v469
        %537 = vmatprep.subr.bf16.mxu0 %v466
        %538 = vmatpush1.bf16.msra.mxu0 %v465
        %539 = vmatprep.subr.bf16.mxu0 %v462
        %540 = vmatpush1.bf16.msra.mxu0 %v461
        %541 = vmatprep.subr.bf16.mxu0 0
        %542 = vmatpush2.bf16.msra.mxu0 0
        %543 = vmatprep.subr.bf16.mxu0 0
        %544 = vmatpush2.bf16.msra.mxu0 0
        %545 = vmatprep.subr.bf16.mxu0 0
        %546 = vmatpush2.bf16.msra.mxu0 0
        %547 = vmatprep.subr.bf16.mxu0 0
        %548 = vmatpush2.bf16.msra.mxu0 0
        %549 = vmatprep.subr.bf16.mxu0 0
        %550 = vmatpush2.bf16.msra.mxu0 0
        %551 = vmatprep.subr.bf16.mxu0 0
        %552 = vmatpush2.bf16.msra.mxu0 0
        %553 = vmatprep.subr.bf16.mxu0 0
        %554 = vmatpush2.bf16.msra.mxu0 0
        %555 = vmatprep.subr.bf16.mxu0 0
        %556 = vmatpush2.bf16.msra.mxu0 0
        %557 = vmatprep.mubr.bf16.mxu0 0
        %558 = vmatmul.mubr.bf16.gmra.mxu0 %v310
        %v559 = vpop.f32.mrf.mxu0
        %v560 = vadd.f32 %v348, %v559
        %v561 = vpop.f32.mrf.mxu0
        %v562 = vadd.f32 %v352, %v561
        %v563 = vpop.f32.mrf.mxu0
        %v564 = vpop.f32.mrf.mxu0
        %565 = vdwg.mxu0
        %566 = vmatprep.subr.bf16.mxu0 %v492
        %567 = vmatpush1.bf16.msra.mxu0 %v491
        %568 = vmatprep.subr.bf16.mxu0 %v488
        %569 = vmatpush1.bf16.msra.mxu0 %v487
        %570 = vmatprep.subr.bf16.mxu0 %v484
        %571 = vmatpush1.bf16.msra.mxu0 %v483
        %572 = vmatprep.subr.bf16.mxu0 %v480
        %573 = vmatpush1.bf16.msra.mxu0 %v479
        %574 = vmatprep.subr.bf16.mxu0 %v476
        %575 = vmatpush1.bf16.msra.mxu0 %v475
        %576 = vmatprep.subr.bf16.mxu0 %v472
        %577 = vmatpush1.bf16.msra.mxu0 %v471
        %578 = vmatprep.subr.bf16.mxu0 %v468
        %579 = vmatpush1.bf16.msra.mxu0 %v467
        %580 = vmatprep.subr.bf16.mxu0 %v464
        %581 = vmatpush1.bf16.msra.mxu0 %v463
        %582 = vmatprep.subr.bf16.mxu0 0
        %583 = vmatpush2.bf16.msra.mxu0 0
        %584 = vmatprep.subr.bf16.mxu0 0
        %585 = vmatpush2.bf16.msra.mxu0 0
        %586 = vmatprep.subr.bf16.mxu0 0
        %587 = vmatpush2.bf16.msra.mxu0 0
        %588 = vmatprep.subr.bf16.mxu0 0
        %589 = vmatpush2.bf16.msra.mxu0 0
        %590 = vmatprep.subr.bf16.mxu0 0
        %591 = vmatpush2.bf16.msra.mxu0 0
        %592 = vmatprep.subr.bf16.mxu0 0
        %593 = vmatpush2.bf16.msra.mxu0 0
        %594 = vmatprep.subr.bf16.mxu0 0
        %595 = vmatpush2.bf16.msra.mxu0 0
        %596 = vmatprep.subr.bf16.mxu0 0
        %597 = vmatpush2.bf16.msra.mxu0 0
        %598 = vmatprep.mubr.bf16.mxu0 0
        %599 = vmatmul.mubr.bf16.gmra.mxu0 %v310
        %v600 = vpop.f32.mrf.mxu0
        %v601 = vadd.f32 %v356, %v600
        %v602 = vpop.f32.mrf.mxu0
        %v603 = vadd.f32 %v360, %v602
        %v604 = vpop.f32.mrf.mxu0
        %v605 = vpop.f32.mrf.mxu0
        %606 = vdwg.mxu0
        %v607 = vmax.f32 %v560, 0.0
        %v608 = vmax.f32 %v562, 0.0
        %v609 = vmax.f32 %v601, 0.0
        %v610 = vmax.f32 %v603, 0.0
        %v611 = vpack.c.bf16 %v607, %v607
        %v612 = vpack.c.bf16 %v608, %v608
        %v613 = vpack.c.bf16 %v609, %v609
        %v614 = vpack.c.bf16 %v610, %v610
        %v615 = vld [vmem:[#allocation9] sm:$0xf]
        %v616 = vld [vmem:[#allocation9 + $0x4] sm:$0xf]
        %v617 = vld [vmem:[#allocation9 + $0x8] sm:$0xf]
        %v618 = vld [vmem:[#allocation9 + $0xc] sm:$0xf]
        %v619 = vld [vmem:[#allocation9 + $0x10] sm:$0xf]
        %v620 = vld [vmem:[#allocation9 + $0x14] sm:$0xf]
        %v621 = vld [vmem:[#allocation9 + $0x18] sm:$0xf]
        %v622 = vld [vmem:[#allocation9 + $0x1c] sm:$0xf]
        %v623 = vld [vmem:[#allocation9 + $0x20] sm:$0xf]
        %v624 = vld [vmem:[#allocation9 + $0x24] sm:$0xf]
        %v625 = vld [vmem:[#allocation9 + $0x28] sm:$0xf]
        %v626 = vld [vmem:[#allocation9 + $0x2c] sm:$0xf]
        %v627 = vld [vmem:[#allocation9 + $0x30] sm:$0xf]
        %v628 = vld [vmem:[#allocation9 + $0x34] sm:$0xf]
        %v629 = vld [vmem:[#allocation9 + $0x38] sm:$0xf]
        %v630 = vld [vmem:[#allocation9 + $0x3c] sm:$0xf]
        %v631 = vld [vmem:[#allocation9 + $0x40] sm:$0xf]
        %v632 = vld [vmem:[#allocation9 + $0x44] sm:$0xf]
        %v633 = vld [vmem:[#allocation9 + $0x48] sm:$0xf]
        %v634 = vld [vmem:[#allocation9 + $0x4c] sm:$0xf]
        %v635 = vld [vmem:[#allocation9 + $0x50] sm:$0xf]
        %v636 = vld [vmem:[#allocation9 + $0x54] sm:$0xf]
        %v637 = vld [vmem:[#allocation9 + $0x58] sm:$0xf]
        %v638 = vld [vmem:[#allocation9 + $0x5c] sm:$0xf]
        %v639 = vld [vmem:[#allocation9 + $0x60] sm:$0xf]
        %v640 = vld [vmem:[#allocation9 + $0x64] sm:$0xf]
        %v641 = vld [vmem:[#allocation9 + $0x68] sm:$0xf]
        %v642 = vld [vmem:[#allocation9 + $0x6c] sm:$0xf]
        %v643 = vld [vmem:[#allocation9 + $0x70] sm:$0xf]
        %v644 = vld [vmem:[#allocation9 + $0x74] sm:$0xf]
        %v645 = vld [vmem:[#allocation9 + $0x78] sm:$0xf]
        %v646 = vld [vmem:[#allocation9 + $0x7c] sm:$0xf]
        %v647 = vld [vmem:[#allocation9 + $0x80] sm:$0xf]
        %v648 = vld [vmem:[#allocation9 + $0x84] sm:$0xf]
        %v649 = vld [vmem:[#allocation9 + $0x88] sm:$0xf]
        %v650 = vld [vmem:[#allocation9 + $0x8c] sm:$0xf]
        %v651 = vld [vmem:[#allocation9 + $0x90] sm:$0xf]
        %v652 = vld [vmem:[#allocation9 + $0x94] sm:$0xf]
        %v653 = vld [vmem:[#allocation9 + $0x98] sm:$0xf]
        %v654 = vld [vmem:[#allocation9 + $0x9c] sm:$0xf]
        %v655 = vld [vmem:[#allocation9 + $0xa0] sm:$0xf]
        %v656 = vld [vmem:[#allocation9 + $0xa4] sm:$0xf]
        %v657 = vld [vmem:[#allocation9 + $0xa8] sm:$0xf]
        %v658 = vld [vmem:[#allocation9 + $0xac] sm:$0xf]
        %v659 = vld [vmem:[#allocation9 + $0xb0] sm:$0xf]
        %v660 = vld [vmem:[#allocation9 + $0xb4] sm:$0xf]
        %v661 = vld [vmem:[#allocation9 + $0xb8] sm:$0xf]
        %v662 = vld [vmem:[#allocation9 + $0xbc] sm:$0xf]
        %v663 = vld [vmem:[#allocation9 + $0xc0] sm:$0xf]
        %v664 = vld [vmem:[#allocation9 + $0xc4] sm:$0xf]
        %v665 = vld [vmem:[#allocation9 + $0xc8] sm:$0xf]
        %v666 = vld [vmem:[#allocation9 + $0xcc] sm:$0xf]
        %v667 = vld [vmem:[#allocation9 + $0xd0] sm:$0xf]
        %v668 = vld [vmem:[#allocation9 + $0xd4] sm:$0xf]
        %v669 = vld [vmem:[#allocation9 + $0xd8] sm:$0xf]
        %v670 = vld [vmem:[#allocation9 + $0xdc] sm:$0xf]
        %v671 = vld [vmem:[#allocation9 + $0xe0] sm:$0xf]
        %v672 = vld [vmem:[#allocation9 + $0xe4] sm:$0xf]
        %v673 = vld [vmem:[#allocation9 + $0xe8] sm:$0xf]
        %v674 = vld [vmem:[#allocation9 + $0xec] sm:$0xf]
        %v675 = vld [vmem:[#allocation9 + $0xf0] sm:$0xf]
        %v676 = vld [vmem:[#allocation9 + $0xf4] sm:$0xf]
        %v677 = vld [vmem:[#allocation9 + $0xf8] sm:$0xf]
        %v678 = vld [vmem:[#allocation9 + $0xfc] sm:$0xf]
        %v679 = vld [vmem:[%s5] sm:$0x1]
        %v681 = vlaneseq
        %v682 = vshrl.u32 %v681, 7
        %v683 = vsub.s32 0, %v682
        %v684 = vrot.slane %v679, %v683
        %v750 = vunpack.c.l.b16 %v615
        %v751 = vunpack.c.l.b16 %v616
        %v752 = vunpack.c.l.b16 %v617
        %v753 = vunpack.c.l.b16 %v618
        %v754 = vunpack.c.l.b16 %v619
        %v755 = vunpack.c.l.b16 %v620
        %v756 = vunpack.c.l.b16 %v621
        %v757 = vunpack.c.l.b16 %v622
        %v758 = vunpack.c.l.b16 %v623
        %v759 = vunpack.c.l.b16 %v624
        %v760 = vunpack.c.l.b16 %v625
        %v761 = vunpack.c.l.b16 %v626
        %v762 = vunpack.c.l.b16 %v627
        %v763 = vunpack.c.l.b16 %v628
        %v764 = vunpack.c.l.b16 %v629
        %v765 = vunpack.c.l.b16 %v630
        %v766 = vunpack.c.l.b16 %v631
        %v767 = vunpack.c.l.b16 %v632
        %v768 = vunpack.c.l.b16 %v633
        %v769 = vunpack.c.l.b16 %v634
        %v770 = vunpack.c.l.b16 %v635
        %v771 = vunpack.c.l.b16 %v636
        %v772 = vunpack.c.l.b16 %v637
        %v773 = vunpack.c.l.b16 %v638
        %v774 = vunpack.c.l.b16 %v639
        %v775 = vunpack.c.l.b16 %v640
        %v776 = vunpack.c.l.b16 %v641
        %v777 = vunpack.c.l.b16 %v642
        %v778 = vunpack.c.l.b16 %v643
        %v779 = vunpack.c.l.b16 %v644
        %v780 = vunpack.c.l.b16 %v645
        %v781 = vunpack.c.l.b16 %v646
        %v782 = vunpack.c.l.b16 %v647
        %v783 = vunpack.c.l.b16 %v648
        %v784 = vunpack.c.l.b16 %v649
        %v785 = vunpack.c.l.b16 %v650
        %v786 = vunpack.c.l.b16 %v651
        %v787 = vunpack.c.l.b16 %v652
        %v788 = vunpack.c.l.b16 %v653
        %v789 = vunpack.c.l.b16 %v654
        %v790 = vunpack.c.l.b16 %v655
        %v791 = vunpack.c.l.b16 %v656
        %v792 = vunpack.c.l.b16 %v657
        %v793 = vunpack.c.l.b16 %v658
        %v794 = vunpack.c.l.b16 %v659
        %v795 = vunpack.c.l.b16 %v660
        %v796 = vunpack.c.l.b16 %v661
        %v797 = vunpack.c.l.b16 %v662
        %v798 = vunpack.c.l.b16 %v663
        %v799 = vunpack.c.l.b16 %v664
        %v800 = vunpack.c.l.b16 %v665
        %v801 = vunpack.c.l.b16 %v666
        %v802 = vunpack.c.l.b16 %v667
        %v803 = vunpack.c.l.b16 %v668
        %v804 = vunpack.c.l.b16 %v669
        %v805 = vunpack.c.l.b16 %v670
        %v806 = vunpack.c.l.b16 %v671
        %v807 = vunpack.c.l.b16 %v672
        %v808 = vunpack.c.l.b16 %v673
        %v809 = vunpack.c.l.b16 %v674
        %v810 = vunpack.c.l.b16 %v675
        %v811 = vunpack.c.l.b16 %v676
        %v812 = vunpack.c.l.b16 %v677
        %v813 = vunpack.c.l.b16 %v678
        %v814 = vpack.c.b16 %v751, %v750
        %v815 = vpack.c.b16 %v753, %v752
        %v816 = vpack.c.b16 %v755, %v754
        %v817 = vpack.c.b16 %v757, %v756
        %v818 = vpack.c.b16 %v759, %v758
        %v819 = vpack.c.b16 %v761, %v760
        %v820 = vpack.c.b16 %v763, %v762
        %v821 = vpack.c.b16 %v765, %v764
        %v822 = vpack.c.b16 %v767, %v766
        %v823 = vpack.c.b16 %v769, %v768
        %v824 = vpack.c.b16 %v771, %v770
        %v825 = vpack.c.b16 %v773, %v772
        %v826 = vpack.c.b16 %v775, %v774
        %v827 = vpack.c.b16 %v777, %v776
        %v828 = vpack.c.b16 %v779, %v778
        %v829 = vpack.c.b16 %v781, %v780
        %v830 = vpack.c.b16 %v783, %v782
        %v831 = vpack.c.b16 %v785, %v784
        %v832 = vpack.c.b16 %v787, %v786
        %v833 = vpack.c.b16 %v789, %v788
        %v834 = vpack.c.b16 %v791, %v790
        %v835 = vpack.c.b16 %v793, %v792
        %v836 = vpack.c.b16 %v795, %v794
        %v837 = vpack.c.b16 %v797, %v796
        %v838 = vpack.c.b16 %v799, %v798
        %v839 = vpack.c.b16 %v801, %v800
        %v840 = vpack.c.b16 %v803, %v802
        %v841 = vpack.c.b16 %v805, %v804
        %v842 = vpack.c.b16 %v807, %v806
        %v843 = vpack.c.b16 %v809, %v808
        %v844 = vpack.c.b16 %v811, %v810
        %v845 = vpack.c.b16 %v813, %v812
        %878 = vmatprep.subr.bf16.mxu0 0
        %879 = vmatpush1.bf16.msra.mxu0 %v821
        %880 = vmatprep.subr.bf16.mxu0 0
        %881 = vmatpush1.bf16.msra.mxu0 %v820
        %882 = vmatprep.subr.bf16.mxu0 0
        %883 = vmatpush1.bf16.msra.mxu0 %v819
        %884 = vmatprep.subr.bf16.mxu0 0
        %885 = vmatpush1.bf16.msra.mxu0 %v818
        %886 = vmatprep.subr.bf16.mxu0 0
        %887 = vmatpush1.bf16.msra.mxu0 %v817
        %888 = vmatprep.subr.bf16.mxu0 0
        %889 = vmatpush1.bf16.msra.mxu0 %v816
        %890 = vmatprep.subr.bf16.mxu0 0
        %891 = vmatpush1.bf16.msra.mxu0 %v815
        %892 = vmatprep.subr.bf16.mxu0 0
        %893 = vmatpush1.bf16.msra.mxu0 %v814
        %894 = vmatprep.subr.bf16.mxu0 0
        %895 = vmatpush2.bf16.msra.mxu0 %v829
        %896 = vmatprep.subr.bf16.mxu0 0
        %897 = vmatpush2.bf16.msra.mxu0 %v828
        %898 = vmatprep.subr.bf16.mxu0 0
        %899 = vmatpush2.bf16.msra.mxu0 %v827
        %900 = vmatprep.subr.bf16.mxu0 0
        %901 = vmatpush2.bf16.msra.mxu0 %v826
        %902 = vmatprep.subr.bf16.mxu0 0
        %903 = vmatpush2.bf16.msra.mxu0 %v825
        %904 = vmatprep.subr.bf16.mxu0 0
        %905 = vmatpush2.bf16.msra.mxu0 %v824
        %906 = vmatprep.subr.bf16.mxu0 0
        %907 = vmatpush2.bf16.msra.mxu0 %v823
        %908 = vmatprep.subr.bf16.mxu0 0
        %909 = vmatpush2.bf16.msra.mxu0 %v822
        %910 = vmatprep.mubr.bf16.mxu0 %v612
        %911 = vmatmul.mubr.bf16.gmra.mxu0 %v611
        %v912 = vpop.f32.mrf.mxu0
        %v913 = vadd.f32 %v684, %v912
        %v914 = vpop.f32.mrf.mxu0
        %v915 = vpop.f32.mrf.mxu0
        %v916 = vpop.f32.mrf.mxu0
        %917 = vdwg.mxu0
        %918 = vmatprep.subr.bf16.mxu0 0
        %919 = vmatpush1.bf16.msra.mxu0 %v837
        %920 = vmatprep.subr.bf16.mxu0 0
        %921 = vmatpush1.bf16.msra.mxu0 %v836
        %922 = vmatprep.subr.bf16.mxu0 0
        %923 = vmatpush1.bf16.msra.mxu0 %v835
        %924 = vmatprep.subr.bf16.mxu0 0
        %925 = vmatpush1.bf16.msra.mxu0 %v834
        %926 = vmatprep.subr.bf16.mxu0 0
        %927 = vmatpush1.bf16.msra.mxu0 %v833
        %928 = vmatprep.subr.bf16.mxu0 0
        %929 = vmatpush1.bf16.msra.mxu0 %v832
        %930 = vmatprep.subr.bf16.mxu0 0
        %931 = vmatpush1.bf16.msra.mxu0 %v831
        %932 = vmatprep.subr.bf16.mxu0 0
        %933 = vmatpush1.bf16.msra.mxu0 %v830
        %934 = vmatprep.subr.bf16.mxu0 0
        %935 = vmatpush2.bf16.msra.mxu0 %v845
        %936 = vmatprep.subr.bf16.mxu0 0
        %937 = vmatpush2.bf16.msra.mxu0 %v844
        %938 = vmatprep.subr.bf16.mxu0 0
        %939 = vmatpush2.bf16.msra.mxu0 %v843
        %940 = vmatprep.subr.bf16.mxu0 0
        %941 = vmatpush2.bf16.msra.mxu0 %v842
        %942 = vmatprep.subr.bf16.mxu0 0
        %943 = vmatpush2.bf16.msra.mxu0 %v841
        %944 = vmatprep.subr.bf16.mxu0 0
        %945 = vmatpush2.bf16.msra.mxu0 %v840
        %946 = vmatprep.subr.bf16.mxu0 0
        %947 = vmatpush2.bf16.msra.mxu0 %v839
        %948 = vmatprep.subr.bf16.mxu0 0
        %949 = vmatpush2.bf16.msra.mxu0 %v838
        %950 = vmatprep.mubr.bf16.mxu0 %v614
        %951 = vmatmul.mubr.bf16.gmra.mxu0 %v613
        %v952 = vpop.f32.mrf.mxu0
        %v953 = vadd.f32 %v913, %v952
        %v954 = vpop.f32.mrf.mxu0
        %v955 = vpop.f32.mrf.mxu0
        %v956 = vpop.f32.mrf.mxu0
        %957 = vdwg.mxu0
        %v958 = vadd.f32 %v953, %v309
        %959 = vadd.xlane.f32.xlu0 %v958
        %v960 = vpop.xlane.xlu0 %959
        %v961 = vrcp.pop 128.0
        %v962 = vmul.f32 %v960, %v961
        %v963 = vsub.f32 %v958, %v962
        %v964 = vmul.f32 %v963, %v963
        %965 = vadd.xlane.f32.xlu0 %v964
        %v966 = vpop.xlane.xlu0 %965
        %v967 = vmul.f32 %v966, 0.007874016
        %v968 = vadd.f32 %v967, 1e-08
        %v969 = vrsqrt.pop %v968
        %v970 = vmul.f32 %v963, %v969
        %s971 = sld [smem:[#allocation2]]
        %s972 = sld [smem:[#allocation2 + $0x1]]
        %v973 = vstv %s971
        %v974 = vmul.f32 %v973, %v970
        %v975 = vstv %s972
        %v976 = vadd.f32 %v974, %v975
        %977 = vst [vmem:[%s307] sm:$0xff] %v976
        %s978 = sand.u32 %s164, 1
        %s979 = scalar_lea.sflag [#allocation4], %s978
        %s980 = sand.u32 %s164, 1
        %s981 = smul.addr %s980, 8
        %s982 = scalar_lea.vmem [#allocation10], %s981
        // Predicated region
        $region61: #{tpu_custom_call.1} parent=43 // pred_check
          %p983 = pneg %p174
        $region62: #{tpu_custom_call.1} parent=43 // pred_check_branch
          %985 = sbr.rel (%p983) target = $region64
        $region63: #{tpu_custom_call.1} parent=43 // pred_region
          %s987 = ssub.s32 128, 128
          %988 = vsyncadd %s979, %s987
          %s989 = smul.addr %s25, 128
          %s990 = scalar_lea.hbm %s6, %s989
          %s992 = sshll.u32 %s982, 4
          %s993 = int_to_ptr.vmem [resolvable:$true] %s992
          %995 = dma.vmem_to_hbm [thread:$0]  %s993, 128, %s990, %s979
        $region64: #{tpu_custom_call.1} parent=43 // pred_fallthru
          _
      $region44: #{tpu_custom_call.1} parent=5 // pred_fallthru
        _
      %p996 = scmp.le.s32.totalorder 2, %s20
      // Predicated region
      $region65: #{tpu_custom_call.1} parent=5 // pred_check
        %p997 = pneg %p996
      $region66: #{tpu_custom_call.1} parent=5 // pred_check_branch
        %999 = sbr.rel (%p997) target = $region68
      $region67: #{tpu_custom_call.1} parent=5 // pred_region
        %s1000 = ssub.s32 %s20, 2
        // Predicated region
        $region69: #{tpu_custom_call.1} parent=67 // pred_check
          %p1001 = pneg %p180
        $region70: #{tpu_custom_call.1} parent=67 // pred_check_branch
          %1003 = sbr.rel (%p1001) target = $region72
        $region71: #{tpu_custom_call.1} parent=67 // pred_region
          %s1004 = sand.u32 %s165, 1
          %s1005 = scalar_lea.sflag [#allocation4], %s1004
          %s1006 = sand.u32 %s165, 1
          %s1007 = smul.addr %s1006, 8
          %s1008 = scalar_lea.vmem [#allocation10], %s1007
          %1009 = dma.done %s1005, 128
        $region72: #{tpu_custom_call.1} parent=67 // pred_fallthru
          _
      $region68: #{tpu_custom_call.1} parent=5 // pred_fallthru
        _
    $region6: #{tpu_custom_call.1} parent=1 // loop_footer
      %s24 = sadd.s32 1, %s20
    $region7: #{tpu_custom_call.1} parent=1 // loop_footer_branch
      %19 = sbr.rel target = $region3
    $region8: #{tpu_custom_call.1} parent=1 // loop_exit
      _
    %1010 = vsyncpa [#allocation3], 1
    %s1011 = scalar_lea.sflag [#allocation3], 1
    %1012 = vsyncpa %s1011, 1
    %1013 = vsyncpa [#allocation8], 1
    %1014 = vsyncpa [#allocation4], 1
    %s1015 = scalar_lea.sflag [#allocation4], 1
    %1016 = vsyncpa %s1015, 1
    %1017 = vsyncpa [#allocation5], 1
    %s1018 = scalar_lea.sflag [#allocation5], 1
    %1019 = vsyncpa %s1018, 1

</llo_original>
